<compile_context>
chip_gen: v7x
topology: tpu7x:2x2x1
jax: 0.10.0
libtpu: 0.0.40
codegen_flags: <defaults>
</compile_context>

<pallas_src>
import jax
import jax.numpy as jnp
from jax.experimental import pallas as pl
from jax.experimental.pallas import tpu as pltpu

LANE = 128
SUBLANE = 8
D_IN, H1, H2, D_OUT = 784, 30, 20, 10


def _round_up(x, m):
    return (x + m - 1) // m * m


def mlp_kernel(x_ref, w1_ref, w23_ref, b_ref, o_ref):
    # Layer 1: [bt, 784] @ [784, 128]  (output cols >= 30 are exact zeros)
    h1 = jnp.dot(x_ref[...], w1_ref[...], preferred_element_type=jnp.float32)
    h1 = jnp.maximum(h1 + b_ref[0:1, :], 0.0)
    # Layer 2: [bt, 128] @ [128, 128]  (output cols >= 20 are exact zeros)
    h2 = jnp.dot(h1.astype(w23_ref.dtype), w23_ref[0],
                 preferred_element_type=jnp.float32)
    h2 = jnp.maximum(h2 + b_ref[1:2, :], 0.0)
    # Layer 3: [bt, 128] @ [128, 128]  (output cols >= 10 are exact zeros)
    out = jnp.dot(h2.astype(w23_ref.dtype), w23_ref[1],
                  preferred_element_type=jnp.float32)
    o_ref[...] = (out + b_ref[2:3, :]).astype(o_ref.dtype)


def _prepare_packed_params(params, compute_dtype):
    """Zero-pad all small operands to lane width and consolidate them."""
    w1, b1, w2, b2, w3, b3 = params
    cd = compute_dtype
    w1p = jnp.zeros((D_IN, LANE), cd).at[:, :H1].set(w1.astype(cd))
    w23 = jnp.zeros((2, LANE, LANE), cd)
    w23 = w23.at[0, :H1, :H2].set(w2.astype(cd))
    w23 = w23.at[1, :H2, :D_OUT].set(w3.astype(cd))
    b = jnp.zeros((3, LANE), jnp.float32)
    b = b.at[0, :H1].set(b1.reshape(-1).astype(jnp.float32))
    b = b.at[1, :H2].set(b2.reshape(-1).astype(jnp.float32))
    b = b.at[2, :D_OUT].set(b3.reshape(-1).astype(jnp.float32))
    return w1p, w23, b


def cnn_forward(x, params, *, batch_tile=512, compute_dtype=jnp.bfloat16):
    """3-layer MLP forward as a single Pallas kernel.  x: [B, 784] -> [B, 10] f32."""
    B, D = x.shape
    assert D == D_IN

    w1p, w23, b = _prepare_packed_params(params, compute_dtype)

    # Clamp tile to the (sublane-rounded) batch so tiny batches don't over-pad;
    # large batches get the big tile and a grid >= 2 (megacore on v7x).
    bt = max(SUBLANE, min(_round_up(batch_tile, SUBLANE), _round_up(B, SUBLANE)))
    B_pad = _round_up(B, bt)
    grid = (B_pad // bt,)

    xc = x.astype(compute_dtype)
    if B_pad != B:
        xc = jnp.pad(xc, ((0, B_pad - B), (0, 0)))

    # Scoped-VMEM budget: double-buffered x + output tiles + resident weights.
    cds = jnp.dtype(compute_dtype).itemsize
    vmem_est = (2 * bt * D_IN * cds          # x tile, double-buffered
                + 2 * bt * LANE * 4          # output tile, double-buffered
                + 2 * D_IN * LANE * cds      # w1 block
                + 2 * 2 * LANE * LANE * cds  # w2/w3 block
                + 2 * SUBLANE * LANE * 4)    # biases
    vmem_limit = int(min(max(vmem_est * 5 // 4, 16 * 1024 * 1024),
                         48 * 1024 * 1024))

    # TODO(synk): if a trace still shows exposed DMA on v5e with large tiles,
    # add pipeline_mode=pl.Buffered(3) on the x BlockSpec and re-sweep.
    out_padded = pl.pallas_call(
        mlp_kernel,
        out_shape=jax.ShapeDtypeStruct((B_pad, LANE), jnp.float32),
        grid_spec=pltpu.PrefetchScalarGridSpec(
            num_scalar_prefetch=0,
            grid=grid,
            in_specs=[
                pl.BlockSpec((bt, D_IN), lambda i: (i, 0)),        # x tile
                pl.BlockSpec((D_IN, LANE), lambda i: (0, 0)),      # w1 (padded)
                pl.BlockSpec((2, LANE, LANE), lambda i: (0, 0, 0)),  # w2, w3 packed
                pl.BlockSpec((3, LANE), lambda i: (0, 0)),         # b1, b2, b3 packed
            ],
            out_specs=pl.BlockSpec((bt, LANE), lambda i: (i, 0)),  # lane-dense output
        ),
        compiler_params=pltpu.CompilerParams(
            dimension_semantics=("parallel",),
            vmem_limit_bytes=vmem_limit,
        ),
    )(xc, w1p, w23, b)

    return out_padded[:B, :D_OUT]


def init_params(key):
    """Deterministic init matching the PyTorch layer shapes.

    PyTorch: fcn1.weight (30, 784), fcn2.weight (20, 30), fcn3.weight (10, 20).
    We store transposes (in, out) so the kernel computes y = x @ W + b,
    identical math to PyTorch's x @ W.T + b.
    """
    k1, k2, k3, k4, k5, k6 = jax.random.split(key, 6)

    def uniform(k, shape, fan_in):
        bound = 1.0 / jnp.sqrt(fan_in)
        return jax.random.uniform(k, shape, jnp.float32, -bound, bound)

    w1 = uniform(k1, (784, 30), 784.0)
    b1 = uniform(k2, (1, 30), 784.0)
    w2 = uniform(k3, (30, 20), 30.0)
    b2 = uniform(k4, (1, 20), 30.0)
    w3 = uniform(k5, (20, 10), 20.0)
    b3 = uniform(k6, (1, 10), 20.0)
    return (w1, b1, w2, b2, w3, b3)


def reference_forward(x, params, compute_dtype=jnp.bfloat16):
    """Pure-JAX reference using the same cast sequence as the kernel."""
    w1, b1, w2, b2, w3, b3 = params
    cd = compute_dtype
    h1 = jnp.maximum(
        jnp.dot(x.astype(cd), w1.astype(cd), preferred_element_type=jnp.float32) + b1, 0.0)
    h2 = jnp.maximum(
        jnp.dot(h1.astype(cd), w2.astype(cd), preferred_element_type=jnp.float32) + b2, 0.0)
    return jnp.dot(h2.astype(cd), w3.astype(cd), preferred_element_type=jnp.float32) + b3


if __name__ == "__main__":
    key = jax.random.PRNGKey(0)
    pkey, xkey1, xkey2 = jax.random.split(key, 3)

    params = init_params(pkey)

    # Case 1: small batch (tile clamps to 8, single grid step).
    B1 = 8
    x1 = jax.random.normal(xkey1, (B1, D_IN), dtype=jnp.float32)
    out1 = jax.block_until_ready(cnn_forward(x1, params))
    ref1 = jax.block_until_ready(reference_forward(x1, params))
    assert out1.shape == (B1, D_OUT)
    assert jnp.allclose(out1, ref1, atol=2e-3, rtol=2e-3)

    # Case 2: batch not divisible by the tile (exercises padding + grid > 1).
    B2 = 52
    x2 = jax.random.normal(xkey2, (B2, D_IN), dtype=jnp.float32)
    out2 = jax.block_until_ready(cnn_forward(x2, params, batch_tile=32))
    ref2 = jax.block_until_ready(reference_forward(x2, params))
    assert out2.shape == (B2, D_OUT)
    assert jnp.allclose(out2, ref2, atol=2e-3, rtol=2e-3)

    print("KERNEL_OK")
</pallas_src>

<mosaic_0001>
module attributes {stable_mosaic.version = 11 : i64} {
  func.func @mlp_kernel(%arg0: i32, %arg1: memref<8x784xbf16, #tpu.memory_space<vmem>>, %arg2: memref<784x128xbf16, #tpu.memory_space<vmem>>, %arg3: memref<2x128x128xbf16, #tpu.memory_space<vmem>>, %arg4: memref<3x128xf32, #tpu.memory_space<vmem>>, %arg5: memref<8x128xf32, #tpu.memory_space<vmem>>) attributes {dimension_semantics = [#tpu.dimension_semantics<parallel>], iteration_bounds = array<i64: 1>, scalar_prefetch = 0 : i64, scratch_operands = 0 : i64, tpu.core_type = #tpu.core_type<tc>, window_params = [{transform_indices = @transform_0, window_bounds = array<i64: 8, 784>}, {pipeline_mode = #tpu.pipeline_mode<synchronous>, transform_indices = @transform_1, window_bounds = array<i64: 784, 128>}, {pipeline_mode = #tpu.pipeline_mode<synchronous>, transform_indices = @transform_2, window_bounds = array<i64: 2, 128, 128>}, {pipeline_mode = #tpu.pipeline_mode<synchronous>, transform_indices = @transform_3, window_bounds = array<i64: 3, 128>}, {transform_indices = @transform_4, window_bounds = array<i64: 8, 128>}]} {
    %c0 = arith.constant 0 : index
    %c0_0 = arith.constant 0 : index
    %0 = vector.load %arg1[%c0, %c0_0] : memref<8x784xbf16, #tpu.memory_space<vmem>>, vector<8x784xbf16>
    %c0_1 = arith.constant 0 : index
    %c0_2 = arith.constant 0 : index
    %1 = vector.load %arg2[%c0_1, %c0_2] : memref<784x128xbf16, #tpu.memory_space<vmem>>, vector<784x128xbf16>
    %cst = arith.constant dense<0.000000e+00> : vector<8x128xf32>
    %2 = tpu.matmul %0, %1, %cst {dimension_numbers = #tpu.dot_dimension_numbers<[1], [0], [0], [1], [0, 0, 1, 1], [], []>} : vector<8x784xbf16>, vector<784x128xbf16>, vector<8x128xf32> -> vector<8x128xf32>
    %c0_3 = arith.constant 0 : index
    %c0_4 = arith.constant 0 : index
    %3 = vector.load %arg4[%c0_3, %c0_4] : memref<3x128xf32, #tpu.memory_space<vmem>>, vector<1x128xf32>
    %4 = vector.broadcast %3 : vector<1x128xf32> to vector<8x128xf32>
    %5 = arith.addf %2, %4 : vector<8x128xf32>
    %cst_5 = arith.constant 0.000000e+00 : f32
    %6 = vector.broadcast %cst_5 : f32 to vector<8x128xf32>
    %7 = arith.maximumf %5, %6 : vector<8x128xf32>
    %8 = arith.truncf %7 : vector<8x128xf32> to vector<8x128xbf16>
    %c0_6 = arith.constant 0 : index
    %c0_7 = arith.constant 0 : index
    %c0_8 = arith.constant 0 : index
    %9 = vector.load %arg3[%c0_6, %c0_7, %c0_8] : memref<2x128x128xbf16, #tpu.memory_space<vmem>>, vector<1x128x128xbf16>
    %10 = vector.shape_cast %9 : vector<1x128x128xbf16> to vector<128x128xbf16>
    %cst_9 = arith.constant dense<0.000000e+00> : vector<8x128xf32>
    %11 = tpu.matmul %8, %10, %cst_9 {dimension_numbers = #tpu.dot_dimension_numbers<[1], [0], [0], [1], [0, 0, 1, 1], [], []>} : vector<8x128xbf16>, vector<128x128xbf16>, vector<8x128xf32> -> vector<8x128xf32>
    %c1 = arith.constant 1 : index
    %c0_10 = arith.constant 0 : index
    %12 = vector.load %arg4[%c1, %c0_10] : memref<3x128xf32, #tpu.memory_space<vmem>>, vector<1x128xf32>
    %13 = vector.broadcast %12 : vector<1x128xf32> to vector<8x128xf32>
    %14 = arith.addf %11, %13 : vector<8x128xf32>
    %cst_11 = arith.constant 0.000000e+00 : f32
    %15 = vector.broadcast %cst_11 : f32 to vector<8x128xf32>
    %16 = arith.maximumf %14, %15 : vector<8x128xf32>
    %17 = arith.truncf %16 : vector<8x128xf32> to vector<8x128xbf16>
    %c1_12 = arith.constant 1 : index
    %c0_13 = arith.constant 0 : index
    %c0_14 = arith.constant 0 : index
    %18 = vector.load %arg3[%c1_12, %c0_13, %c0_14] : memref<2x128x128xbf16, #tpu.memory_space<vmem>>, vector<1x128x128xbf16>
    %19 = vector.shape_cast %18 : vector<1x128x128xbf16> to vector<128x128xbf16>
    %cst_15 = arith.constant dense<0.000000e+00> : vector<8x128xf32>
    %20 = tpu.matmul %17, %19, %cst_15 {dimension_numbers = #tpu.dot_dimension_numbers<[1], [0], [0], [1], [0, 0, 1, 1], [], []>} : vector<8x128xbf16>, vector<128x128xbf16>, vector<8x128xf32> -> vector<8x128xf32>
    %c2 = arith.constant 2 : index
    %c0_16 = arith.constant 0 : index
    %21 = vector.load %arg4[%c2, %c0_16] : memref<3x128xf32, #tpu.memory_space<vmem>>, vector<1x128xf32>
    %22 = vector.broadcast %21 : vector<1x128xf32> to vector<8x128xf32>
    %23 = arith.addf %20, %22 : vector<8x128xf32>
    %c0_17 = arith.constant 0 : index
    %c0_18 = arith.constant 0 : index
    %24 = vector.load %arg5[%c0_17, %c0_18] : memref<8x128xf32, #tpu.memory_space<vmem>>, vector<8x128xf32>
    tpu.vector_store %arg5[%c0_17, %c0_18], %23 {strides = array<i32>} : memref<8x128xf32, #tpu.memory_space<vmem>>, vector<8x128xf32>,
    return
  }
  func.func @transform_0(%arg0: i32) -> (i32, i32) {
    %c0_i32 = arith.constant 0 : i32
    %c0_i32_0 = arith.constant 0 : i32
    return %arg0, %c0_i32 : i32, i32
  }
  func.func @transform_1(%arg0: i32) -> (i32, i32) {
    %c0_i32 = arith.constant 0 : i32
    %c0_i32_0 = arith.constant 0 : i32
    %c0_i32_1 = arith.constant 0 : i32
    return %c0_i32, %c0_i32_0 : i32, i32
  }
  func.func @transform_2(%arg0: i32) -> (i32, i32, i32) {
    %c0_i32 = arith.constant 0 : i32
    %c0_i32_0 = arith.constant 0 : i32
    %c0_i32_1 = arith.constant 0 : i32
    %c0_i32_2 = arith.constant 0 : i32
    return %c0_i32, %c0_i32_0, %c0_i32_1 : i32, i32, i32
  }
  func.func @transform_3(%arg0: i32) -> (i32, i32) {
    %c0_i32 = arith.constant 0 : i32
    %c0_i32_0 = arith.constant 0 : i32
    %c0_i32_1 = arith.constant 0 : i32
    return %c0_i32, %c0_i32_0 : i32, i32
  }
  func.func @transform_4(%arg0: i32) -> (i32, i32) {
    %c0_i32 = arith.constant 0 : i32
    %c0_i32_0 = arith.constant 0 : i32
    return %arg0, %c0_i32 : i32, i32
  }
}

</mosaic_0001>

<llo_original>
// kernel: tpu_custom_call.1
$region0: #{tpu_custom_call.1}
  #allocation0 [shape = 'u32[]', space=smem, size = 0x4, offset = 0x4, fixed_abs, tag = 'smem constant byte address 0x4 - core index']
  #allocation1 [shape = 'u32[144,128]{1,0:T(1,128)}', space=vmem, size = 0x12000, scoped, tag = 'internal scratch']
  %s0 = inlined_call_operand.hbm [shape: bf16[8,784], index: 0, kind: input, shape index: {}]
  %s1 = inlined_call_operand.hbm [shape: bf16[784,128], index: 1, kind: input, shape index: {}]
  %s2 = inlined_call_operand.hbm [shape: bf16[2,128,128], index: 2, kind: input, shape index: {}]
  %s3 = inlined_call_operand.vmem [shape: f32[3,128], index: 3, kind: input, shape index: {}]
  %s4 = inlined_call_operand.hbm [shape: f32[8,128], index: 4, kind: output, shape index: {}]
  %s5 = sld [smem:[#allocation0]]
  $region38: #{tpu_custom_call.1} parent=0
    _
  %s7 = ssub.s32 1, %s5
  %s8 = scalar_select 0, %s7, %s5
  $region1: #{tpu_custom_call.1} parent=0
    #allocation2 [shape = 'u8[14336]{0}', space=vmem, size = 0x3800, scoped, tag = 'input window, operand 0, single buffered']
    #allocation3 [shape = 's32[1]{0}', space=sflag, size = 0x4, scoped, tag = 'scoped memory for tpu_custom_call.1']
    #allocation4 [shape = 's32[1]{0}', space=sflag, size = 0x4, scoped, tag = 'scoped memory for tpu_custom_call.1']
    #allocation5 [shape = 'u8[200704]{0}', space=vmem, size = 0x31000, scoped, tag = 'input window, operand 1, single buffered']
    #allocation6 [shape = 's32[1]{0}', space=sflag, size = 0x4, scoped, tag = 'scoped memory for tpu_custom_call.1']
    #allocation7 [shape = 'u8[65536]{0}', space=vmem, size = 0x10000, scoped, tag = 'input window, operand 2, single buffered']
    #allocation8 [shape = 'u8[4096]{0}', space=vmem, size = 0x1000, scoped, tag = 'output window, operand 0, single buffered']
    %9 = vsyncpa [#allocation3], 0
    %10 = vsyncpa [#allocation6], 0
    %11 = vsyncpa [#allocation4], 0
    // Predicated region
    $region2: #{tpu_custom_call.1} parent=1 // pred_check
      _
    $region3: #{tpu_custom_call.1} parent=1 // pred_check_branch
      %13 = sbr.rel (0) target = $region5
    $region4: #{tpu_custom_call.1} parent=1 // pred_region
      %s15 = ssub.s32 448, 448
      %16 = vsyncadd [#allocation3], %s15
      %s18 = sshll.u32 [#allocation2], 4
      %s19 = int_to_ptr.vmem [resolvable:$true] %s18
      %21 = dma.hbm_to_vmem [thread:$0]  %s0, 448, %s19, [#allocation3]
    $region5: #{tpu_custom_call.1} parent=1 // pred_fallthru
      _
    // Predicated region
    $region6: #{tpu_custom_call.1} parent=1 // pred_check
      _
    $region7: #{tpu_custom_call.1} parent=1 // pred_check_branch
      %23 = sbr.rel (0) target = $region9
    $region8: #{tpu_custom_call.1} parent=1 // pred_region
      %s25 = ssub.s32 6272, 6272
      %26 = vsyncadd [#allocation6], %s25
      %s27 = sshll.u32 [#allocation5], 4
      %s28 = int_to_ptr.vmem [resolvable:$true] %s27
      %33 = dma.hbm_to_vmem [thread:$0]  %s1, 6272, %s28, [#allocation6], 64, 64, 4
    $region9: #{tpu_custom_call.1} parent=1 // pred_fallthru
      _
    // Predicated region
    $region10: #{tpu_custom_call.1} parent=1 // pred_check
      _
    $region11: #{tpu_custom_call.1} parent=1 // pred_check_branch
      %35 = sbr.rel (0) target = $region13
    $region12: #{tpu_custom_call.1} parent=1 // pred_region
      %s37 = ssub.s32 2048, 2048
      %38 = vsyncadd [#allocation6], %s37
      %s39 = sshll.u32 [#allocation7], 4
      %s40 = int_to_ptr.vmem [resolvable:$true] %s39
      %45 = dma.hbm_to_vmem [thread:$0]  %s2, 2048, %s40, [#allocation6], 64, 64, 4
    $region13: #{tpu_custom_call.1} parent=1 // pred_fallthru
      _
    // Predicated region
    $region14: #{tpu_custom_call.1} parent=1 // pred_check
      _
    $region15: #{tpu_custom_call.1} parent=1 // pred_check_branch
      %47 = sbr.rel (0) target = $region17
    $region16: #{tpu_custom_call.1} parent=1 // pred_region
      _
    $region17: #{tpu_custom_call.1} parent=1 // pred_fallthru
      _
    // Predicated region
    $region18: #{tpu_custom_call.1} parent=1 // pred_check
      _
    $region19: #{tpu_custom_call.1} parent=1 // pred_check_branch
      %49 = sbr.rel (0) target = $region21
    $region20: #{tpu_custom_call.1} parent=1 // pred_region
      %50 = dma.done [#allocation3], 448
    $region21: #{tpu_custom_call.1} parent=1 // pred_fallthru
      _
    // Predicated region
    $region22: #{tpu_custom_call.1} parent=1 // pred_check
      _
    $region23: #{tpu_custom_call.1} parent=1 // pred_check_branch
      %52 = sbr.rel (0) target = $region25
    $region24: #{tpu_custom_call.1} parent=1 // pred_region
      %53 = dma.done [#allocation6], 6272
    $region25: #{tpu_custom_call.1} parent=1 // pred_fallthru
      _
    // Predicated region
    $region26: #{tpu_custom_call.1} parent=1 // pred_check
      _
    $region27: #{tpu_custom_call.1} parent=1 // pred_check_branch
      %55 = sbr.rel (0) target = $region29
    $region28: #{tpu_custom_call.1} parent=1 // pred_region
      %56 = dma.done [#allocation6], 2048
    $region29: #{tpu_custom_call.1} parent=1 // pred_fallthru
      _
    %v58 = vld [vmem:[#allocation2] sm:$0xff]
    %v59 = vld [vmem:[#allocation2 + $0x8] sm:$0xff]
    %v60 = vld [vmem:[#allocation2 + $0x10] sm:$0xff]
    %v61 = vld [vmem:[#allocation2 + $0x18] sm:$0xf]
    %v62 = vld [vmem:[#allocation5] sm:$0xf]
    %v63 = vld [vmem:[#allocation5 + $0x4] sm:$0xf]
    %v64 = vld [vmem:[#allocation5 + $0x8] sm:$0xf]
    %v65 = vld [vmem:[#allocation5 + $0xc] sm:$0xf]
    %v66 = vld [vmem:[#allocation5 + $0x10] sm:$0xf]
    %v67 = vld [vmem:[#allocation5 + $0x14] sm:$0xf]
    %v68 = vld [vmem:[#allocation5 + $0x18] sm:$0xf]
    %v69 = vld [vmem:[#allocation5 + $0x1c] sm:$0xf]
    %v70 = vld [vmem:[#allocation5 + $0x20] sm:$0xf]
    %v71 = vld [vmem:[#allocation5 + $0x24] sm:$0xf]
    %v72 = vld [vmem:[#allocation5 + $0x28] sm:$0xf]
    %v73 = vld [vmem:[#allocation5 + $0x2c] sm:$0xf]
    %v74 = vld [vmem:[#allocation5 + $0x30] sm:$0xf]
    %v75 = vld [vmem:[#allocation5 + $0x34] sm:$0xf]
    %v76 = vld [vmem:[#allocation5 + $0x38] sm:$0xf]
    %v77 = vld [vmem:[#allocation5 + $0x3c] sm:$0xf]
    %v78 = vld [vmem:[#allocation5 + $0x40] sm:$0xf]
    %v79 = vld [vmem:[#allocation5 + $0x44] sm:$0xf]
    %v80 = vld [vmem:[#allocation5 + $0x48] sm:$0xf]
    %v81 = vld [vmem:[#allocation5 + $0x4c] sm:$0xf]
    %v82 = vld [vmem:[#allocation5 + $0x50] sm:$0xf]
    %v83 = vld [vmem:[#allocation5 + $0x54] sm:$0xf]
    %v84 = vld [vmem:[#allocation5 + $0x58] sm:$0xf]
    %v85 = vld [vmem:[#allocation5 + $0x5c] sm:$0xf]
    %v86 = vld [vmem:[#allocation5 + $0x60] sm:$0xf]
    %v87 = vld [vmem:[#allocation5 + $0x64] sm:$0xf]
    %v88 = vld [vmem:[#allocation5 + $0x68] sm:$0xf]
    %v89 = vld [vmem:[#allocation5 + $0x6c] sm:$0xf]
    %v90 = vld [vmem:[#allocation5 + $0x70] sm:$0xf]
    %v91 = vld [vmem:[#allocation5 + $0x74] sm:$0xf]
    %v92 = vld [vmem:[#allocation5 + $0x78] sm:$0xf]
    %v93 = vld [vmem:[#allocation5 + $0x7c] sm:$0xf]
    %v94 = vld [vmem:[#allocation5 + $0x80] sm:$0xf]
    %v95 = vld [vmem:[#allocation5 + $0x84] sm:$0xf]
    %v96 = vld [vmem:[#allocation5 + $0x88] sm:$0xf]
    %v97 = vld [vmem:[#allocation5 + $0x8c] sm:$0xf]
    %v98 = vld [vmem:[#allocation5 + $0x90] sm:$0xf]
    %v99 = vld [vmem:[#allocation5 + $0x94] sm:$0xf]
    %v100 = vld [vmem:[#allocation5 + $0x98] sm:$0xf]
    %v101 = vld [vmem:[#allocation5 + $0x9c] sm:$0xf]
    %v102 = vld [vmem:[#allocation5 + $0xa0] sm:$0xf]
    %v103 = vld [vmem:[#allocation5 + $0xa4] sm:$0xf]
    %v104 = vld [vmem:[#allocation5 + $0xa8] sm:$0xf]
    %v105 = vld [vmem:[#allocation5 + $0xac] sm:$0xf]
    %v106 = vld [vmem:[#allocation5 + $0xb0] sm:$0xf]
    %v107 = vld [vmem:[#allocation5 + $0xb4] sm:$0xf]
    %v108 = vld [vmem:[#allocation5 + $0xb8] sm:$0xf]
    %v109 = vld [vmem:[#allocation5 + $0xbc] sm:$0xf]
    %v110 = vld [vmem:[#allocation5 + $0xc0] sm:$0xf]
    %v111 = vld [vmem:[#allocation5 + $0xc4] sm:$0xf]
    %v112 = vld [vmem:[#allocation5 + $0xc8] sm:$0xf]
    %v113 = vld [vmem:[#allocation5 + $0xcc] sm:$0xf]
    %v114 = vld [vmem:[#allocation5 + $0xd0] sm:$0xf]
    %v115 = vld [vmem:[#allocation5 + $0xd4] sm:$0xf]
    %v116 = vld [vmem:[#allocation5 + $0xd8] sm:$0xf]
    %v117 = vld [vmem:[#allocation5 + $0xdc] sm:$0xf]
    %v118 = vld [vmem:[#allocation5 + $0xe0] sm:$0xf]
    %v119 = vld [vmem:[#allocation5 + $0xe4] sm:$0xf]
    %v120 = vld [vmem:[#allocation5 + $0xe8] sm:$0xf]
    %v121 = vld [vmem:[#allocation5 + $0xec] sm:$0xf]
    %v122 = vld [vmem:[#allocation5 + $0xf0] sm:$0xf]
    %v123 = vld [vmem:[#allocation5 + $0xf4] sm:$0xf]
    %v124 = vld [vmem:[#allocation5 + $0xf8] sm:$0xf]
    %v125 = vld [vmem:[#allocation5 + $0xfc] sm:$0xf]
    %v126 = vld [vmem:[#allocation5 + $0x100] sm:$0xf]
    %v127 = vld [vmem:[#allocation5 + $0x104] sm:$0xf]
    %v128 = vld [vmem:[#allocation5 + $0x108] sm:$0xf]
    %v129 = vld [vmem:[#allocation5 + $0x10c] sm:$0xf]
    %v130 = vld [vmem:[#allocation5 + $0x110] sm:$0xf]
    %v131 = vld [vmem:[#allocation5 + $0x114] sm:$0xf]
    %v132 = vld [vmem:[#allocation5 + $0x118] sm:$0xf]
    %v133 = vld [vmem:[#allocation5 + $0x11c] sm:$0xf]
    %v134 = vld [vmem:[#allocation5 + $0x120] sm:$0xf]
    %v135 = vld [vmem:[#allocation5 + $0x124] sm:$0xf]
    %v136 = vld [vmem:[#allocation5 + $0x128] sm:$0xf]
    %v137 = vld [vmem:[#allocation5 + $0x12c] sm:$0xf]
    %v138 = vld [vmem:[#allocation5 + $0x130] sm:$0xf]
    %v139 = vld [vmem:[#allocation5 + $0x134] sm:$0xf]
    %v140 = vld [vmem:[#allocation5 + $0x138] sm:$0xf]
    %v141 = vld [vmem:[#allocation5 + $0x13c] sm:$0xf]
    %v142 = vld [vmem:[#allocation5 + $0x140] sm:$0xf]
    %v143 = vld [vmem:[#allocation5 + $0x144] sm:$0xf]
    %v144 = vld [vmem:[#allocation5 + $0x148] sm:$0xf]
    %v145 = vld [vmem:[#allocation5 + $0x14c] sm:$0xf]
    %v146 = vld [vmem:[#allocation5 + $0x150] sm:$0xf]
    %v147 = vld [vmem:[#allocation5 + $0x154] sm:$0xf]
    %v148 = vld [vmem:[#allocation5 + $0x158] sm:$0xf]
    %v149 = vld [vmem:[#allocation5 + $0x15c] sm:$0xf]
    %v150 = vld [vmem:[#allocation5 + $0x160] sm:$0xf]
    %v151 = vld [vmem:[#allocation5 + $0x164] sm:$0xf]
    %v152 = vld [vmem:[#allocation5 + $0x168] sm:$0xf]
    %v153 = vld [vmem:[#allocation5 + $0x16c] sm:$0xf]
    %v154 = vld [vmem:[#allocation5 + $0x170] sm:$0xf]
    %v155 = vld [vmem:[#allocation5 + $0x174] sm:$0xf]
    %v156 = vld [vmem:[#allocation5 + $0x178] sm:$0xf]
    %v157 = vld [vmem:[#allocation5 + $0x17c] sm:$0xf]
    %v158 = vld [vmem:[#allocation5 + $0x180] sm:$0xf]
    %v159 = vld [vmem:[#allocation5 + $0x184] sm:$0xf]
    %v160 = vld [vmem:[%s3] sm:$0x1]
    %v161 = vlaneseq
    %v162 = vshrl.u32 %v161, 7
    %v163 = vsub.s32 0, %v162
    %v164 = vrot.slane %v160, %v163
    %v169 = vunpack.c.l.b16 %v58
    %v170 = vunpack.c.h.b16 %v58
    %v171 = vunpack.c.l.b16 %v59
    %v172 = vunpack.c.h.b16 %v59
    %v173 = vunpack.c.l.b16 %v60
    %v174 = vunpack.c.h.b16 %v60
    %v175 = vunpack.c.l.b16 %v61
    %v176 = vpack.c.b16 %v169, %v169
    %v177 = vpack.c.b16 %v170, %v170
    %v178 = vpack.c.b16 %v171, %v171
    %v179 = vpack.c.b16 %v172, %v172
    %v180 = vpack.c.b16 %v173, %v173
    %v181 = vpack.c.b16 %v174, %v174
    %v182 = vpack.c.b16 %v175, %v175
    %v287 = vunpack.c.l.b16 %v62
    %v288 = vunpack.c.l.b16 %v63
    %v289 = vunpack.c.l.b16 %v64
    %v290 = vunpack.c.l.b16 %v65
    %v291 = vunpack.c.l.b16 %v66
    %v292 = vunpack.c.l.b16 %v67
    %v293 = vunpack.c.l.b16 %v68
    %v294 = vunpack.c.l.b16 %v69
    %v295 = vunpack.c.l.b16 %v70
    %v296 = vunpack.c.l.b16 %v71
    %v297 = vunpack.c.l.b16 %v72
    %v298 = vunpack.c.l.b16 %v73
    %v299 = vunpack.c.l.b16 %v74
    %v300 = vunpack.c.l.b16 %v75
    %v301 = vunpack.c.l.b16 %v76
    %v302 = vunpack.c.l.b16 %v77
    %v303 = vunpack.c.l.b16 %v78
    %v304 = vunpack.c.l.b16 %v79
    %v305 = vunpack.c.l.b16 %v80
    %v306 = vunpack.c.l.b16 %v81
    %v307 = vunpack.c.l.b16 %v82
    %v308 = vunpack.c.l.b16 %v83
    %v309 = vunpack.c.l.b16 %v84
    %v310 = vunpack.c.l.b16 %v85
    %v311 = vunpack.c.l.b16 %v86
    %v312 = vunpack.c.l.b16 %v87
    %v313 = vunpack.c.l.b16 %v88
    %v314 = vunpack.c.l.b16 %v89
    %v315 = vunpack.c.l.b16 %v90
    %v316 = vunpack.c.l.b16 %v91
    %v317 = vunpack.c.l.b16 %v92
    %v318 = vunpack.c.l.b16 %v93
    %v319 = vunpack.c.l.b16 %v94
    %v320 = vunpack.c.l.b16 %v95
    %v321 = vunpack.c.l.b16 %v96
    %v322 = vunpack.c.l.b16 %v97
    %v323 = vunpack.c.l.b16 %v98
    %v324 = vunpack.c.l.b16 %v99
    %v325 = vunpack.c.l.b16 %v100
    %v326 = vunpack.c.l.b16 %v101
    %v327 = vunpack.c.l.b16 %v102
    %v328 = vunpack.c.l.b16 %v103
    %v329 = vunpack.c.l.b16 %v104
    %v330 = vunpack.c.l.b16 %v105
    %v331 = vunpack.c.l.b16 %v106
    %v332 = vunpack.c.l.b16 %v107
    %v333 = vunpack.c.l.b16 %v108
    %v334 = vunpack.c.l.b16 %v109
    %v335 = vunpack.c.l.b16 %v110
    %v336 = vunpack.c.l.b16 %v111
    %v337 = vunpack.c.l.b16 %v112
    %v338 = vunpack.c.l.b16 %v113
    %v339 = vunpack.c.l.b16 %v114
    %v340 = vunpack.c.l.b16 %v115
    %v341 = vunpack.c.l.b16 %v116
    %v342 = vunpack.c.l.b16 %v117
    %v343 = vunpack.c.l.b16 %v118
    %v344 = vunpack.c.l.b16 %v119
    %v345 = vunpack.c.l.b16 %v120
    %v346 = vunpack.c.l.b16 %v121
    %v347 = vunpack.c.l.b16 %v122
    %v348 = vunpack.c.l.b16 %v123
    %v349 = vunpack.c.l.b16 %v124
    %v350 = vunpack.c.l.b16 %v125
    %v351 = vunpack.c.l.b16 %v126
    %v352 = vunpack.c.l.b16 %v127
    %v353 = vunpack.c.l.b16 %v128
    %v354 = vunpack.c.l.b16 %v129
    %v355 = vunpack.c.l.b16 %v130
    %v356 = vunpack.c.l.b16 %v131
    %v357 = vunpack.c.l.b16 %v132
    %v358 = vunpack.c.l.b16 %v133
    %v359 = vunpack.c.l.b16 %v134
    %v360 = vunpack.c.l.b16 %v135
    %v361 = vunpack.c.l.b16 %v136
    %v362 = vunpack.c.l.b16 %v137
    %v363 = vunpack.c.l.b16 %v138
    %v364 = vunpack.c.l.b16 %v139
    %v365 = vunpack.c.l.b16 %v140
    %v366 = vunpack.c.l.b16 %v141
    %v367 = vunpack.c.l.b16 %v142
    %v368 = vunpack.c.l.b16 %v143
    %v369 = vunpack.c.l.b16 %v144
    %v370 = vunpack.c.l.b16 %v145
    %v371 = vunpack.c.l.b16 %v146
    %v372 = vunpack.c.l.b16 %v147
    %v373 = vunpack.c.l.b16 %v148
    %v374 = vunpack.c.l.b16 %v149
    %v375 = vunpack.c.l.b16 %v150
    %v376 = vunpack.c.l.b16 %v151
    %v377 = vunpack.c.l.b16 %v152
    %v378 = vunpack.c.l.b16 %v153
    %v379 = vunpack.c.l.b16 %v154
    %v380 = vunpack.c.l.b16 %v155
    %v381 = vunpack.c.l.b16 %v156
    %v382 = vunpack.c.l.b16 %v157
    %v383 = vunpack.c.l.b16 %v158
    %v384 = vunpack.c.l.b16 %v159
    %v385 = vpack.c.b16 %v288, %v287
    %v386 = vpack.c.b16 %v290, %v289
    %v387 = vpack.c.b16 %v292, %v291
    %v388 = vpack.c.b16 %v294, %v293
    %v389 = vpack.c.b16 %v296, %v295
    %v390 = vpack.c.b16 %v298, %v297
    %v391 = vpack.c.b16 %v300, %v299
    %v392 = vpack.c.b16 %v302, %v301
    %v393 = vpack.c.b16 %v304, %v303
    %v394 = vpack.c.b16 %v306, %v305
    %v395 = vpack.c.b16 %v308, %v307
    %v396 = vpack.c.b16 %v310, %v309
    %v397 = vpack.c.b16 %v312, %v311
    %v398 = vpack.c.b16 %v314, %v313
    %v399 = vpack.c.b16 %v316, %v315
    %v400 = vpack.c.b16 %v318, %v317
    %v401 = vpack.c.b16 %v320, %v319
    %v402 = vpack.c.b16 %v322, %v321
    %v403 = vpack.c.b16 %v324, %v323
    %v404 = vpack.c.b16 %v326, %v325
    %v405 = vpack.c.b16 %v328, %v327
    %v406 = vpack.c.b16 %v330, %v329
    %v407 = vpack.c.b16 %v332, %v331
    %v408 = vpack.c.b16 %v334, %v333
    %v409 = vpack.c.b16 %v336, %v335
    %v410 = vpack.c.b16 %v338, %v337
    %v411 = vpack.c.b16 %v340, %v339
    %v412 = vpack.c.b16 %v342, %v341
    %v413 = vpack.c.b16 %v344, %v343
    %v414 = vpack.c.b16 %v346, %v345
    %v415 = vpack.c.b16 %v348, %v347
    %v416 = vpack.c.b16 %v350, %v349
    %v417 = vpack.c.b16 %v352, %v351
    %v418 = vpack.c.b16 %v354, %v353
    %v419 = vpack.c.b16 %v356, %v355
    %v420 = vpack.c.b16 %v358, %v357
    %v421 = vpack.c.b16 %v360, %v359
    %v422 = vpack.c.b16 %v362, %v361
    %v423 = vpack.c.b16 %v364, %v363
    %v424 = vpack.c.b16 %v366, %v365
    %v425 = vpack.c.b16 %v368, %v367
    %v426 = vpack.c.b16 %v370, %v369
    %v427 = vpack.c.b16 %v372, %v371
    %v428 = vpack.c.b16 %v374, %v373
    %v429 = vpack.c.b16 %v376, %v375
    %v430 = vpack.c.b16 %v378, %v377
    %v431 = vpack.c.b16 %v380, %v379
    %v432 = vpack.c.b16 %v382, %v381
    %v433 = vpack.c.b16 %v384, %v383
    %vm483 = vcmask 130048
    %v485 = vsel %vm483, %v182, 0
    %487 = vmatprep.subr.bf16.mxu0 0
    %488 = vmatpush1.bf16.msra.mxu0 %v385
    %489 = vmatprep.subr.bf16.mxu0 0
    %490 = vmatpush1.bf16.msra.mxu0 %v386
    %491 = vmatprep.subr.bf16.mxu0 0
    %492 = vmatpush1.bf16.msra.mxu0 %v387
    %493 = vmatprep.subr.bf16.mxu0 0
    %494 = vmatpush1.bf16.msra.mxu0 %v388
    %495 = vmatprep.subr.bf16.mxu0 0
    %496 = vmatpush1.bf16.msra.mxu0 %v389
    %497 = vmatprep.subr.bf16.mxu0 0
    %498 = vmatpush1.bf16.msra.mxu0 %v390
    %499 = vmatprep.subr.bf16.mxu0 0
    %500 = vmatpush1.bf16.msra.mxu0 %v391
    %501 = vmatprep.subr.bf16.mxu0 0
    %502 = vmatpush1.bf16.msra.mxu0 %v392
    %503 = vmatprep.subr.bf16.mxu0 0
    %504 = vmatpush1.bf16.msra.mxu0 %v393
    %505 = vmatprep.subr.bf16.mxu0 0
    %506 = vmatpush1.bf16.msra.mxu0 %v394
    %507 = vmatprep.subr.bf16.mxu0 0
    %508 = vmatpush1.bf16.msra.mxu0 %v395
    %509 = vmatprep.subr.bf16.mxu0 0
    %510 = vmatpush1.bf16.msra.mxu0 %v396
    %511 = vmatprep.subr.bf16.mxu0 0
    %512 = vmatpush1.bf16.msra.mxu0 %v397
    %513 = vmatprep.subr.bf16.mxu0 0
    %514 = vmatpush1.bf16.msra.mxu0 %v398
    %515 = vmatprep.subr.bf16.mxu0 0
    %516 = vmatpush1.bf16.msra.mxu0 %v399
    %517 = vmatprep.subr.bf16.mxu0 0
    %518 = vmatpush1.bf16.msra.mxu0 %v400
    %519 = vmatprep.mubr.bf16.mxu0 %v177
    %520 = vmatmul.mubr.bf16.gmra.mrb[0].mxu0 %v176
    %v521 = vpop.f32.mrb[0].mxu0
    %v522 = vadd.f32 %v164, %v521
    %v523 = vpop.f32.mrb[0].mxu0
    %v524 = vpop.f32.mrb[0].mxu0
    %v525 = vpop.f32.mrb[0].mxu0
    %526 = vdwg.mxu0
    %527 = vmatprep.subr.bf16.mxu0 0
    %528 = vmatpush1.bf16.msra.mxu0 %v401
    %529 = vmatprep.subr.bf16.mxu0 0
    %530 = vmatpush1.bf16.msra.mxu0 %v402
    %531 = vmatprep.subr.bf16.mxu0 0
    %532 = vmatpush1.bf16.msra.mxu0 %v403
    %533 = vmatprep.subr.bf16.mxu0 0
    %534 = vmatpush1.bf16.msra.mxu0 %v404
    %535 = vmatprep.subr.bf16.mxu0 0
    %536 = vmatpush1.bf16.msra.mxu0 %v405
    %537 = vmatprep.subr.bf16.mxu0 0
    %538 = vmatpush1.bf16.msra.mxu0 %v406
    %539 = vmatprep.subr.bf16.mxu0 0
    %540 = vmatpush1.bf16.msra.mxu0 %v407
    %541 = vmatprep.subr.bf16.mxu0 0
    %542 = vmatpush1.bf16.msra.mxu0 %v408
    %543 = vmatprep.subr.bf16.mxu0 0
    %544 = vmatpush1.bf16.msra.mxu0 %v409
    %545 = vmatprep.subr.bf16.mxu0 0
    %546 = vmatpush1.bf16.msra.mxu0 %v410
    %547 = vmatprep.subr.bf16.mxu0 0
    %548 = vmatpush1.bf16.msra.mxu0 %v411
    %549 = vmatprep.subr.bf16.mxu0 0
    %550 = vmatpush1.bf16.msra.mxu0 %v412
    %551 = vmatprep.subr.bf16.mxu0 0
    %552 = vmatpush1.bf16.msra.mxu0 %v413
    %553 = vmatprep.subr.bf16.mxu0 0
    %554 = vmatpush1.bf16.msra.mxu0 %v414
    %555 = vmatprep.subr.bf16.mxu0 0
    %556 = vmatpush1.bf16.msra.mxu0 %v415
    %557 = vmatprep.subr.bf16.mxu0 0
    %558 = vmatpush1.bf16.msra.mxu0 %v416
    %559 = vmatprep.mubr.bf16.mxu0 %v179
    %560 = vmatmul.mubr.bf16.gmra.mrb[0].mxu0 %v178
    %v561 = vpop.f32.mrb[0].mxu0
    %v562 = vadd.f32 %v522, %v561
    %v563 = vpop.f32.mrb[0].mxu0
    %v564 = vpop.f32.mrb[0].mxu0
    %v565 = vpop.f32.mrb[0].mxu0
    %566 = vdwg.mxu0
    %567 = vmatprep.subr.bf16.mxu0 0
    %568 = vmatpush1.bf16.msra.mxu0 %v417
    %569 = vmatprep.subr.bf16.mxu0 0
    %570 = vmatpush1.bf16.msra.mxu0 %v418
    %571 = vmatprep.subr.bf16.mxu0 0
    %572 = vmatpush1.bf16.msra.mxu0 %v419
    %573 = vmatprep.subr.bf16.mxu0 0
    %574 = vmatpush1.bf16.msra.mxu0 %v420
    %575 = vmatprep.subr.bf16.mxu0 0
    %576 = vmatpush1.bf16.msra.mxu0 %v421
    %577 = vmatprep.subr.bf16.mxu0 0
    %578 = vmatpush1.bf16.msra.mxu0 %v422
    %579 = vmatprep.subr.bf16.mxu0 0
    %580 = vmatpush1.bf16.msra.mxu0 %v423
    %581 = vmatprep.subr.bf16.mxu0 0
    %582 = vmatpush1.bf16.msra.mxu0 %v424
    %583 = vmatprep.subr.bf16.mxu0 0
    %584 = vmatpush1.bf16.msra.mxu0 %v425
    %585 = vmatprep.subr.bf16.mxu0 0
    %586 = vmatpush1.bf16.msra.mxu0 %v426
    %587 = vmatprep.subr.bf16.mxu0 0
    %588 = vmatpush1.bf16.msra.mxu0 %v427
    %589 = vmatprep.subr.bf16.mxu0 0
    %590 = vmatpush1.bf16.msra.mxu0 %v428
    %591 = vmatprep.subr.bf16.mxu0 0
    %592 = vmatpush1.bf16.msra.mxu0 %v429
    %593 = vmatprep.subr.bf16.mxu0 0
    %594 = vmatpush1.bf16.msra.mxu0 %v430
    %595 = vmatprep.subr.bf16.mxu0 0
    %596 = vmatpush1.bf16.msra.mxu0 %v431
    %597 = vmatprep.subr.bf16.mxu0 0
    %598 = vmatpush1.bf16.msra.mxu0 %v432
    %599 = vmatprep.mubr.bf16.mxu0 %v181
    %600 = vmatmul.mubr.bf16.gmra.mrb[0].mxu0 %v180
    %v601 = vpop.f32.mrb[0].mxu0
    %v602 = vadd.f32 %v562, %v601
    %v603 = vpop.f32.mrb[0].mxu0
    %v604 = vpop.f32.mrb[0].mxu0
    %v605 = vpop.f32.mrb[0].mxu0
    %606 = vdwg.mxu0
    %607 = vmatprep.subr.bf16.mxu0 0
    %608 = vmatpush1.bf16.msra.mxu0 %v433
    %609 = vmatprep.subr.bf16.mxu0 0
    %610 = vmatpush1.bf16.msra.mxu0 0
    %611 = vmatprep.subr.bf16.mxu0 0
    %612 = vmatpush1.bf16.msra.mxu0 0
    %613 = vmatprep.subr.bf16.mxu0 0
    %614 = vmatpush1.bf16.msra.mxu0 0
    %615 = vmatprep.subr.bf16.mxu0 0
    %616 = vmatpush1.bf16.msra.mxu0 0
    %617 = vmatprep.subr.bf16.mxu0 0
    %618 = vmatpush1.bf16.msra.mxu0 0
    %619 = vmatprep.subr.bf16.mxu0 0
    %620 = vmatpush1.bf16.msra.mxu0 0
    %621 = vmatprep.subr.bf16.mxu0 0
    %622 = vmatpush1.bf16.msra.mxu0 0
    %623 = vmatprep.subr.bf16.mxu0 0
    %624 = vmatpush1.bf16.msra.mxu0 0
    %625 = vmatprep.subr.bf16.mxu0 0
    %626 = vmatpush1.bf16.msra.mxu0 0
    %627 = vmatprep.subr.bf16.mxu0 0
    %628 = vmatpush1.bf16.msra.mxu0 0
    %629 = vmatprep.subr.bf16.mxu0 0
    %630 = vmatpush1.bf16.msra.mxu0 0
    %631 = vmatprep.subr.bf16.mxu0 0
    %632 = vmatpush1.bf16.msra.mxu0 0
    %633 = vmatprep.subr.bf16.mxu0 0
    %634 = vmatpush1.bf16.msra.mxu0 0
    %635 = vmatprep.subr.bf16.mxu0 0
    %636 = vmatpush1.bf16.msra.mxu0 0
    %637 = vmatprep.subr.bf16.mxu0 0
    %638 = vmatpush1.bf16.msra.mxu0 0
    %639 = vmatprep.mubr.bf16.mxu0 0
    %640 = vmatmul.mubr.bf16.gmra.mrb[0].mxu0 %v485
    %v641 = vpop.f32.mrb[0].mxu0
    %v642 = vadd.f32 %v602, %v641
    %v643 = vpop.f32.mrb[0].mxu0
    %v644 = vpop.f32.mrb[0].mxu0
    %v645 = vpop.f32.mrb[0].mxu0
    %646 = vdwg.mxu0
    %v647 = vmax.f32 %v642, 0.0
    %v648 = vpack.c.bf16 %v647, %v647
    %v649 = vld [vmem:[#allocation7] sm:$0xf]
    %v650 = vld [vmem:[#allocation7 + $0x4] sm:$0xf]
    %v651 = vld [vmem:[#allocation7 + $0x8] sm:$0xf]
    %v652 = vld [vmem:[#allocation7 + $0xc] sm:$0xf]
    %v653 = vld [vmem:[#allocation7 + $0x10] sm:$0xf]
    %v654 = vld [vmem:[#allocation7 + $0x14] sm:$0xf]
    %v655 = vld [vmem:[#allocation7 + $0x18] sm:$0xf]
    %v656 = vld [vmem:[#allocation7 + $0x1c] sm:$0xf]
    %v657 = vld [vmem:[#allocation7 + $0x20] sm:$0xf]
    %v658 = vld [vmem:[#allocation7 + $0x24] sm:$0xf]
    %v659 = vld [vmem:[#allocation7 + $0x28] sm:$0xf]
    %v660 = vld [vmem:[#allocation7 + $0x2c] sm:$0xf]
    %v661 = vld [vmem:[#allocation7 + $0x30] sm:$0xf]
    %v662 = vld [vmem:[#allocation7 + $0x34] sm:$0xf]
    %v663 = vld [vmem:[#allocation7 + $0x38] sm:$0xf]
    %v664 = vld [vmem:[#allocation7 + $0x3c] sm:$0xf]
    %v665 = vld [vmem:[%s3 + $0x1] sm:$0x1]
    %v666 = vlaneseq
    %v667 = vshrl.u32 %v666, 7
    %v668 = vsub.s32 0, %v667
    %v669 = vrot.slane %v665, %v668
    %v686 = vunpack.c.l.b16 %v649
    %v687 = vunpack.c.l.b16 %v650
    %v688 = vunpack.c.l.b16 %v651
    %v689 = vunpack.c.l.b16 %v652
    %v690 = vunpack.c.l.b16 %v653
    %v691 = vunpack.c.l.b16 %v654
    %v692 = vunpack.c.l.b16 %v655
    %v693 = vunpack.c.l.b16 %v656
    %v694 = vunpack.c.l.b16 %v657
    %v695 = vunpack.c.l.b16 %v658
    %v696 = vunpack.c.l.b16 %v659
    %v697 = vunpack.c.l.b16 %v660
    %v698 = vunpack.c.l.b16 %v661
    %v699 = vunpack.c.l.b16 %v662
    %v700 = vunpack.c.l.b16 %v663
    %v701 = vunpack.c.l.b16 %v664
    %v702 = vpack.c.b16 %v687, %v686
    %v703 = vpack.c.b16 %v689, %v688
    %v704 = vpack.c.b16 %v691, %v690
    %v705 = vpack.c.b16 %v693, %v692
    %v706 = vpack.c.b16 %v695, %v694
    %v707 = vpack.c.b16 %v697, %v696
    %v708 = vpack.c.b16 %v699, %v698
    %v709 = vpack.c.b16 %v701, %v700
    %718 = vmatprep.subr.bf16.mxu0 0
    %719 = vmatpush1.bf16.msra.mxu0 %v702
    %720 = vmatprep.subr.bf16.mxu0 0
    %721 = vmatpush1.bf16.msra.mxu0 %v703
    %722 = vmatprep.subr.bf16.mxu0 0
    %723 = vmatpush1.bf16.msra.mxu0 %v704
    %724 = vmatprep.subr.bf16.mxu0 0
    %725 = vmatpush1.bf16.msra.mxu0 %v705
    %726 = vmatprep.subr.bf16.mxu0 0
    %727 = vmatpush1.bf16.msra.mxu0 %v706
    %728 = vmatprep.subr.bf16.mxu0 0
    %729 = vmatpush1.bf16.msra.mxu0 %v707
    %730 = vmatprep.subr.bf16.mxu0 0
    %731 = vmatpush1.bf16.msra.mxu0 %v708
    %732 = vmatprep.subr.bf16.mxu0 0
    %733 = vmatpush1.bf16.msra.mxu0 %v709
    %734 = vmatprep.subr.bf16.mxu0 0
    %735 = vmatpush1.bf16.msra.mxu0 0
    %736 = vmatprep.subr.bf16.mxu0 0
    %737 = vmatpush1.bf16.msra.mxu0 0
    %738 = vmatprep.subr.bf16.mxu0 0
    %739 = vmatpush1.bf16.msra.mxu0 0
    %740 = vmatprep.subr.bf16.mxu0 0
    %741 = vmatpush1.bf16.msra.mxu0 0
    %742 = vmatprep.subr.bf16.mxu0 0
    %743 = vmatpush1.bf16.msra.mxu0 0
    %744 = vmatprep.subr.bf16.mxu0 0
    %745 = vmatpush1.bf16.msra.mxu0 0
    %746 = vmatprep.subr.bf16.mxu0 0
    %747 = vmatpush1.bf16.msra.mxu0 0
    %748 = vmatprep.subr.bf16.mxu0 0
    %749 = vmatpush1.bf16.msra.mxu0 0
    %750 = vmatprep.mubr.bf16.mxu0 0
    %751 = vmatmul.mubr.bf16.gmra.mrb[0].mxu0 %v648
    %v752 = vpop.f32.mrb[0].mxu0
    %v753 = vadd.f32 %v669, %v752
    %v754 = vpop.f32.mrb[0].mxu0
    %v755 = vpop.f32.mrb[0].mxu0
    %v756 = vpop.f32.mrb[0].mxu0
    %757 = vdwg.mxu0
    %v758 = vmax.f32 %v753, 0.0
    %v759 = vpack.c.bf16 %v758, %v758
    %s760 = scalar_lea.vmem [#allocation7], 64
    %v761 = vld [vmem:[%s760] sm:$0xf]
    %v762 = vld [vmem:[%s760 + $0x4] sm:$0xf]
    %v763 = vld [vmem:[%s760 + $0x8] sm:$0xf]
    %v764 = vld [vmem:[%s760 + $0xc] sm:$0xf]
    %v765 = vld [vmem:[%s760 + $0x10] sm:$0xf]
    %v766 = vld [vmem:[%s760 + $0x14] sm:$0xf]
    %v767 = vld [vmem:[%s760 + $0x18] sm:$0xf]
    %v768 = vld [vmem:[%s760 + $0x1c] sm:$0xf]
    %v769 = vld [vmem:[%s760 + $0x20] sm:$0xf]
    %v770 = vld [vmem:[%s760 + $0x24] sm:$0xf]
    %v771 = vld [vmem:[%s760 + $0x28] sm:$0xf]
    %v772 = vld [vmem:[%s760 + $0x2c] sm:$0xf]
    %v773 = vld [vmem:[%s760 + $0x30] sm:$0xf]
    %v774 = vld [vmem:[%s760 + $0x34] sm:$0xf]
    %v775 = vld [vmem:[%s760 + $0x38] sm:$0xf]
    %v776 = vld [vmem:[%s760 + $0x3c] sm:$0xf]
    %v777 = vld [vmem:[%s3 + $0x2] sm:$0x1]
    %v778 = vlaneseq
    %v779 = vshrl.u32 %v778, 7
    %v780 = vsub.s32 0, %v779
    %v781 = vrot.slane %v777, %v780
    %v798 = vunpack.c.l.b16 %v761
    %v799 = vunpack.c.l.b16 %v762
    %v800 = vunpack.c.l.b16 %v763
    %v801 = vunpack.c.l.b16 %v764
    %v802 = vunpack.c.l.b16 %v765
    %v803 = vunpack.c.l.b16 %v766
    %v804 = vunpack.c.l.b16 %v767
    %v805 = vunpack.c.l.b16 %v768
    %v806 = vunpack.c.l.b16 %v769
    %v807 = vunpack.c.l.b16 %v770
    %v808 = vunpack.c.l.b16 %v771
    %v809 = vunpack.c.l.b16 %v772
    %v810 = vunpack.c.l.b16 %v773
    %v811 = vunpack.c.l.b16 %v774
    %v812 = vunpack.c.l.b16 %v775
    %v813 = vunpack.c.l.b16 %v776
    %v814 = vpack.c.b16 %v799, %v798
    %v815 = vpack.c.b16 %v801, %v800
    %v816 = vpack.c.b16 %v803, %v802
    %v817 = vpack.c.b16 %v805, %v804
    %v818 = vpack.c.b16 %v807, %v806
    %v819 = vpack.c.b16 %v809, %v808
    %v820 = vpack.c.b16 %v811, %v810
    %v821 = vpack.c.b16 %v813, %v812
    %830 = vmatprep.subr.bf16.mxu0 0
    %831 = vmatpush1.bf16.msra.mxu0 %v814
    %832 = vmatprep.subr.bf16.mxu0 0
    %833 = vmatpush1.bf16.msra.mxu0 %v815
    %834 = vmatprep.subr.bf16.mxu0 0
    %835 = vmatpush1.bf16.msra.mxu0 %v816
    %836 = vmatprep.subr.bf16.mxu0 0
    %837 = vmatpush1.bf16.msra.mxu0 %v817
    %838 = vmatprep.subr.bf16.mxu0 0
    %839 = vmatpush1.bf16.msra.mxu0 %v818
    %840 = vmatprep.subr.bf16.mxu0 0
    %841 = vmatpush1.bf16.msra.mxu0 %v819
    %842 = vmatprep.subr.bf16.mxu0 0
    %843 = vmatpush1.bf16.msra.mxu0 %v820
    %844 = vmatprep.subr.bf16.mxu0 0
    %845 = vmatpush1.bf16.msra.mxu0 %v821
    %846 = vmatprep.subr.bf16.mxu0 0
    %847 = vmatpush1.bf16.msra.mxu0 0
    %848 = vmatprep.subr.bf16.mxu0 0
    %849 = vmatpush1.bf16.msra.mxu0 0
    %850 = vmatprep.subr.bf16.mxu0 0
    %851 = vmatpush1.bf16.msra.mxu0 0
    %852 = vmatprep.subr.bf16.mxu0 0
    %853 = vmatpush1.bf16.msra.mxu0 0
    %854 = vmatprep.subr.bf16.mxu0 0
    %855 = vmatpush1.bf16.msra.mxu0 0
    %856 = vmatprep.subr.bf16.mxu0 0
    %857 = vmatpush1.bf16.msra.mxu0 0
    %858 = vmatprep.subr.bf16.mxu0 0
    %859 = vmatpush1.bf16.msra.mxu0 0
    %860 = vmatprep.subr.bf16.mxu0 0
    %861 = vmatpush1.bf16.msra.mxu0 0
    %862 = vmatprep.mubr.bf16.mxu0 0
    %863 = vmatmul.mubr.bf16.gmra.mrb[0].mxu0 %v759
    %v864 = vpop.f32.mrb[0].mxu0
    %v865 = vadd.f32 %v781, %v864
    %v866 = vpop.f32.mrb[0].mxu0
    %v867 = vpop.f32.mrb[0].mxu0
    %v868 = vpop.f32.mrb[0].mxu0
    %869 = vdwg.mxu0
    %870 = vst [vmem:[#allocation8] sm:$0xff] %v865
    // Predicated region
    $region30: #{tpu_custom_call.1} parent=1 // pred_check
      _
    $region31: #{tpu_custom_call.1} parent=1 // pred_check_branch
      %872 = sbr.rel (0) target = $region33
    $region32: #{tpu_custom_call.1} parent=1 // pred_region
      %s874 = ssub.s32 128, 128
      %875 = vsyncadd [#allocation4], %s874
      %s877 = sshll.u32 [#allocation8], 4
      %s878 = int_to_ptr.vmem [resolvable:$true] %s877
      %880 = dma.vmem_to_hbm [thread:$0]  %s878, 128, %s4, [#allocation4]
    $region33: #{tpu_custom_call.1} parent=1 // pred_fallthru
      _
    // Predicated region
    $region34: #{tpu_custom_call.1} parent=1 // pred_check
      _
    $region35: #{tpu_custom_call.1} parent=1 // pred_check_branch
      %882 = sbr.rel (0) target = $region37
    $region36: #{tpu_custom_call.1} parent=1 // pred_region
      %883 = dma.done [#allocation4], 128
    $region37: #{tpu_custom_call.1} parent=1 // pred_fallthru
      _
    %884 = vsyncpa [#allocation3], 1
    %885 = vsyncpa [#allocation6], 1
    %886 = vsyncpa [#allocation4], 1

</llo_original>
